<compile_context>
chip_gen: v7x
topology: tpu7x:2x2x1
jax: 0.10.0
libtpu: 0.0.40
codegen_flags: <defaults>
</compile_context>

<pallas_src>
import functools

import jax
import jax.numpy as jnp
from jax.experimental import pallas as pl
from jax.experimental.pallas import tpu as pltpu

EPS = 1e-8


def _round_up(x: int, m: int) -> int:
    return ((x + m - 1) // m) * m


def _default_act_dtype():
    """bf16 activations on bf16-native VPU/EUP chips (v6e/v7x), f32 otherwise."""
    try:
        kind = jax.devices()[0].device_kind.lower()
    except Exception:
        return jnp.float32
    if any(tag in kind for tag in ("v6", "v7", "7x")):
        return jnp.bfloat16
    return jnp.float32


def _ff_kernel(obs_ref, acs_ref, w1o_ref, w1a_ref, w2_ref, wout_ref,
               obs_stats_ref, acs_stats_ref, hid_bias_ref, out_rows_ref,
               next_obs_ref, delta_ref, *, mm_dtype, act_dtype):
    """One batch tile: normalize -> 2x(Linear+Tanh) -> Linear -> unnormalize.

    obs_ref       : (tm, ob_dim) f32 raw observations (batch tile)
    acs_ref       : (tm, ac_dim) f32 raw actions       (batch tile)
    w1o/w1a       : (ob_dim, size) / (ac_dim, size)  first layer, split (resident)
    w2            : (size, size)                      second hidden layer (resident)
    wout          : (size, ob_dim)                    output layer (resident)
    obs_stats_ref : (2, ob_dim) f32, rows = [obs_mean, 1/(obs_std+eps)]
    acs_stats_ref : (2, ac_dim) f32, rows = [acs_mean, 1/(acs_std+eps)]
    hid_bias_ref  : (2, size)   f32, rows = [b1, b2]
    out_rows_ref  : (3, ob_dim) f32, rows = [b_out, delta_mean, delta_std]
    next_obs_ref  : (tm, ob_dim) f32 output
    delta_ref     : (tm, ob_dim) f32 output (normalized delta prediction)
    """
    obs = obs_ref[...]                                   # raw obs (f32)
    acs = acs_ref[...]

    # In-kernel normalization (f32 VPU; cheap — kernel is store/overhead bound).
    obs_n = (obs - obs_stats_ref[0:1, :]) * obs_stats_ref[1:2, :]
    acs_n = (acs - acs_stats_ref[0:1, :]) * acs_stats_ref[1:2, :]

    b1 = hid_bias_ref[0:1, :]
    b2 = hid_bias_ref[1:2, :]
    b_out = out_rows_ref[0:1, :]
    d_mean = out_rows_ref[1:2, :]
    d_std = out_rows_ref[2:3, :]

    # Layer 1: two MXU pushes (obs part + acs part), f32 accumulation.
    acc = jnp.dot(obs_n.astype(mm_dtype), w1o_ref[...],
                  preferred_element_type=jnp.float32)
    acc = acc + jnp.dot(acs_n.astype(mm_dtype), w1a_ref[...],
                        preferred_element_type=jnp.float32)
    h = jnp.tanh((acc + b1).astype(act_dtype))

    # Layer 2: hidden -> hidden, tanh.
    acc = jnp.dot(h.astype(mm_dtype), w2_ref[...],
                  preferred_element_type=jnp.float32)
    h = jnp.tanh((acc + b2).astype(act_dtype))

    # Output layer (identity activation).
    delta_n = jnp.dot(h.astype(mm_dtype), wout_ref[...],
                      preferred_element_type=jnp.float32) + b_out

    # Two direct full-block stores (no packed-slab concat, no wrapper split).
    delta_ref[...] = delta_n
    next_obs_ref[...] = obs + delta_n * d_std + d_mean


def ff_model_forward(obs, acs, obs_mean, obs_std, acs_mean, acs_std,
                     delta_mean, delta_std, params, *, block_m=4096,
                     matmul_dtype=jnp.bfloat16, act_dtype=None):
    """Pallas wrapper for FFModel.forward.

    obs: (B, ob_dim), acs: (B, ac_dim); stats are (D,) vectors; params is
    (w1, b1, w2, b2, wout, bout) for the n_layers=2 MLP.

    Returns (next_obs_pred, delta_pred_normalized), both (B, ob_dim) f32.
    """
    if act_dtype is None:
        act_dtype = _default_act_dtype()

    obs = obs.astype(jnp.float32)
    acs = acs.astype(jnp.float32)
    n_batch, ob_dim = obs.shape
    ac_dim = acs.shape[1]

    w1, b1, w2, b2, wout, bout = [p.astype(jnp.float32) for p in params]
    size = w1.shape[1]
    mm = matmul_dtype

    # --- tiny one-time parameter / stats packing (plain JAX) ---
    w1_obs = w1[:ob_dim].astype(mm)                      # (ob_dim, size)
    w1_acs = w1[ob_dim:].astype(mm)                      # (ac_dim, size)
    obs_stats = jnp.stack(
        [obs_mean.astype(jnp.float32),
         1.0 / (obs_std.astype(jnp.float32) + EPS)], axis=0)    # (2, ob_dim)
    acs_stats = jnp.stack(
        [acs_mean.astype(jnp.float32),
         1.0 / (acs_std.astype(jnp.float32) + EPS)], axis=0)    # (2, ac_dim)
    hid_bias = jnp.stack([b1, b2], axis=0)                       # (2, size)
    out_rows = jnp.stack([bout,
                          delta_mean.astype(jnp.float32),
                          delta_std.astype(jnp.float32)], axis=0)  # (3, ob_dim)

    # --- batch tiling: no padding, >=2 grid steps when possible (v7x megacore) ---
    half = pl.cdiv(n_batch, 2)
    tm = min(block_m, _round_up(half, 8))
    tm = _round_up(tm, 8)
    if tm >= n_batch:
        tm = n_batch          # single block; block == full dim is always legal
    grid = (pl.cdiv(n_batch, tm),)   # partial last block: OOB writes are masked

    kernel = functools.partial(_ff_kernel, mm_dtype=mm, act_dtype=act_dtype)

    next_obs, delta_n = pl.pallas_call(
        kernel,
        grid=grid,
        in_specs=[
            pl.BlockSpec((tm, ob_dim), lambda i: (i, 0)),     # obs (batch-tiled)
            pl.BlockSpec((tm, ac_dim), lambda i: (i, 0)),     # acs (batch-tiled)
            pl.BlockSpec((ob_dim, size), lambda i: (0, 0)),   # w1_obs (resident)
            pl.BlockSpec((ac_dim, size), lambda i: (0, 0)),   # w1_acs (resident)
            pl.BlockSpec((size, size), lambda i: (0, 0)),     # w2 (resident)
            pl.BlockSpec((size, ob_dim), lambda i: (0, 0)),   # wout (resident)
            pl.BlockSpec((2, ob_dim), lambda i: (0, 0)),      # [obs_mean, 1/obs_std]
            pl.BlockSpec((2, ac_dim), lambda i: (0, 0)),      # [acs_mean, 1/acs_std]
            pl.BlockSpec((2, size), lambda i: (0, 0)),        # [b1, b2]
            pl.BlockSpec((3, ob_dim), lambda i: (0, 0)),      # [bout, d_mean, d_std]
        ],
        out_specs=[
            pl.BlockSpec((tm, ob_dim), lambda i: (i, 0)),     # next_obs
            pl.BlockSpec((tm, ob_dim), lambda i: (i, 0)),     # delta_norm
        ],
        out_shape=[
            jax.ShapeDtypeStruct((n_batch, ob_dim), jnp.float32),
            jax.ShapeDtypeStruct((n_batch, ob_dim), jnp.float32),
        ],
        compiler_params=pltpu.CompilerParams(
            dimension_semantics=("parallel",),        # megacore on v7x
            vmem_limit_bytes=32 * 1024 * 1024),
    )(obs, acs, w1_obs, w1_acs, w2.astype(mm), wout.astype(mm),
      obs_stats, acs_stats, hid_bias, out_rows)

    return next_obs, delta_n


def ff_model_reference(obs, acs, obs_mean, obs_std, acs_mean, acs_std,
                       delta_mean, delta_std, params):
    """Pure-JAX reference mirroring the PyTorch forward."""
    w1, b1, w2, b2, wout, bout = params
    obs_n = (obs - obs_mean) / (obs_std + EPS)
    acs_n = (acs - acs_mean) / (acs_std + EPS)
    x = jnp.concatenate([obs_n, acs_n], axis=1)
    h = jnp.tanh(x @ w1 + b1)
    h = jnp.tanh(h @ w2 + b2)
    delta_n = h @ wout + bout
    next_obs = obs + delta_n * delta_std + delta_mean
    return next_obs, delta_n


def init_params(key, ob_dim, ac_dim, size):
    """Deterministic synthetic init: 2 hidden layers (n_layers=2) + output layer."""
    ks = jax.random.split(key, 6)
    in_dim = ob_dim + ac_dim
    w1 = jax.random.normal(ks[0], (in_dim, size), jnp.float32) * 0.1
    b1 = jax.random.normal(ks[1], (size,), jnp.float32) * 0.01
    w2 = jax.random.normal(ks[2], (size, size), jnp.float32) * 0.1
    b2 = jax.random.normal(ks[3], (size,), jnp.float32) * 0.01
    wout = jax.random.normal(ks[4], (size, ob_dim), jnp.float32) * 0.1
    bout = jax.random.normal(ks[5], (ob_dim,), jnp.float32) * 0.01
    return (w1, b1, w2, b2, wout, bout)


if __name__ == "__main__":
    # Small shapes consistent with the module: batch=8, ob_dim=16, ac_dim=4,
    # n_layers=2, size=32.
    batch, ob_dim, ac_dim, size = 8, 16, 4, 32

    key = jax.random.PRNGKey(0)
    k_obs, k_acs, k_stat, k_par = jax.random.split(key, 4)

    obs = jax.random.normal(k_obs, (batch, ob_dim), jnp.float32) * 2.0 + 1.0
    acs = jax.random.normal(k_acs, (batch, ac_dim), jnp.float32)

    ks = jax.random.split(k_stat, 6)
    obs_mean = jax.random.normal(ks[0], (ob_dim,), jnp.float32)
    obs_std = jnp.abs(jax.random.normal(ks[1], (ob_dim,), jnp.float32)) + 0.5
    acs_mean = jax.random.normal(ks[2], (ac_dim,), jnp.float32)
    acs_std = jnp.abs(jax.random.normal(ks[3], (ac_dim,), jnp.float32)) + 0.5
    delta_mean = jax.random.normal(ks[4], (ob_dim,), jnp.float32) * 0.1
    delta_std = jnp.abs(jax.random.normal(ks[5], (ob_dim,), jnp.float32)) + 0.1

    params = init_params(k_par, ob_dim, ac_dim, size)
    stats = (obs_mean, obs_std, acs_mean, acs_std, delta_mean, delta_std)

    ref_next, ref_delta = ff_model_reference(obs, acs, *stats, params)

    # 1) f32 matmul + f32 activation path — tight check of the exact semantics.
    next_f32, delta_f32 = ff_model_forward(
        obs, acs, *stats, params, matmul_dtype=jnp.float32,
        act_dtype=jnp.float32)
    jax.block_until_ready((next_f32, delta_f32))
    assert next_f32.shape == (batch, ob_dim)
    assert delta_f32.shape == (batch, ob_dim)
    assert jnp.allclose(next_f32, ref_next, atol=1e-4, rtol=1e-4)
    assert jnp.allclose(delta_f32, ref_delta, atol=1e-4, rtol=1e-4)

    # 2) Production default: bf16 MXU operands, auto act dtype (bf16 on
    #    v6e/v7x, f32 on v5e/older) — loose tolerance vs f32 reference.
    next_df, delta_df = ff_model_forward(obs, acs, *stats, params)
    jax.block_until_ready((next_df, delta_df))
    assert jnp.allclose(next_df, ref_next, atol=5e-2, rtol=5e-2)
    assert jnp.allclose(delta_df, ref_delta, atol=5e-2, rtol=5e-2)

    # 3) Multi-step grid + ragged (non-divisible) batch, no padding path:
    #    B=300 with block_m=64 -> tm=64, grid=(5,), masked partial last block.
    big_b = 300
    kb1, kb2 = jax.random.split(jax.random.PRNGKey(1))
    obs_big = jax.random.normal(kb1, (big_b, ob_dim), jnp.float32) * 2.0 + 1.0
    acs_big = jax.random.normal(kb2, (big_b, ac_dim), jnp.float32)
    ref_next_b, ref_delta_b = ff_model_reference(obs_big, acs_big, *stats, params)
    next_b, delta_b = ff_model_forward(
        obs_big, acs_big, *stats, params, block_m=64,
        matmul_dtype=jnp.float32, act_dtype=jnp.float32)
    jax.block_until_ready((next_b, delta_b))
    assert next_b.shape == (big_b, ob_dim)
    assert jnp.allclose(next_b, ref_next_b, atol=1e-4, rtol=1e-4)
    assert jnp.allclose(delta_b, ref_delta_b, atol=1e-4, rtol=1e-4)

    # 4) Default tiling on a mid-size batch: tm capped at ~B/2 -> 2 grid steps
    #    (both v7x TensorCores busy).
    mid_b = 1024
    km1, km2 = jax.random.split(jax.random.PRNGKey(2))
    obs_mid = jax.random.normal(km1, (mid_b, ob_dim), jnp.float32)
    acs_mid = jax.random.normal(km2, (mid_b, ac_dim), jnp.float32)
    ref_next_m, ref_delta_m = ff_model_reference(obs_mid, acs_mid, *stats, params)
    next_m, delta_m = ff_model_forward(obs_mid, acs_mid, *stats, params)
    jax.block_until_ready((next_m, delta_m))
    assert jnp.allclose(next_m, ref_next_m, atol=5e-2, rtol=5e-2)
    assert jnp.allclose(delta_m, ref_delta_m, atol=5e-2, rtol=5e-2)

    print("KERNEL_OK")
</pallas_src>

<mosaic_0001>
module attributes {stable_mosaic.version = 11 : i64} {
  func.func @_ff_kernel(%arg0: i32, %arg1: memref<8x16xf32, #tpu.memory_space<vmem>>, %arg2: memref<8x4xf32, #tpu.memory_space<vmem>>, %arg3: memref<16x32xf32, #tpu.memory_space<vmem>>, %arg4: memref<4x32xf32, #tpu.memory_space<vmem>>, %arg5: memref<32x32xf32, #tpu.memory_space<vmem>>, %arg6: memref<32x16xf32, #tpu.memory_space<vmem>>, %arg7: memref<2x16xf32, #tpu.memory_space<vmem>>, %arg8: memref<2x4xf32, #tpu.memory_space<vmem>>, %arg9: memref<2x32xf32, #tpu.memory_space<vmem>>, %arg10: memref<3x16xf32, #tpu.memory_space<vmem>>, %arg11: memref<8x16xf32, #tpu.memory_space<vmem>>, %arg12: memref<8x16xf32, #tpu.memory_space<vmem>>) attributes {dimension_semantics = [#tpu.dimension_semantics<parallel>], iteration_bounds = array<i64: 1>, scalar_prefetch = 0 : i64, scratch_operands = 0 : i64, tpu.core_type = #tpu.core_type<tc>, window_params = [{transform_indices = @transform_0, window_bounds = array<i64: 8, 16>}, {transform_indices = @transform_1, window_bounds = array<i64: 8, 4>}, {pipeline_mode = #tpu.pipeline_mode<synchronous>, transform_indices = @transform_2, window_bounds = array<i64: 16, 32>}, {pipeline_mode = #tpu.pipeline_mode<synchronous>, transform_indices = @transform_3, window_bounds = array<i64: 4, 32>}, {pipeline_mode = #tpu.pipeline_mode<synchronous>, transform_indices = @transform_4, window_bounds = array<i64: 32, 32>}, {pipeline_mode = #tpu.pipeline_mode<synchronous>, transform_indices = @transform_5, window_bounds = array<i64: 32, 16>}, {pipeline_mode = #tpu.pipeline_mode<synchronous>, transform_indices = @transform_6, window_bounds = array<i64: 2, 16>}, {pipeline_mode = #tpu.pipeline_mode<synchronous>, transform_indices = @transform_7, window_bounds = array<i64: 2, 4>}, {pipeline_mode = #tpu.pipeline_mode<synchronous>, transform_indices = @transform_8, window_bounds = array<i64: 2, 32>}, {pipeline_mode = #tpu.pipeline_mode<synchronous>, transform_indices = @transform_9, window_bounds = array<i64: 3, 16>}, {transform_indices = @transform_10, window_bounds = array<i64: 8, 16>}, {transform_indices = @transform_11, window_bounds = array<i64: 8, 16>}]} {
    %c0 = arith.constant 0 : index
    %c0_0 = arith.constant 0 : index
    %0 = vector.load %arg1[%c0, %c0_0] : memref<8x16xf32, #tpu.memory_space<vmem>>, vector<8x16xf32>
    %c0_1 = arith.constant 0 : index
    %c0_2 = arith.constant 0 : index
    %1 = vector.load %arg2[%c0_1, %c0_2] : memref<8x4xf32, #tpu.memory_space<vmem>>, vector<8x4xf32>
    %c0_3 = arith.constant 0 : index
    %c0_4 = arith.constant 0 : index
    %2 = vector.load %arg7[%c0_3, %c0_4] : memref<2x16xf32, #tpu.memory_space<vmem>>, vector<1x16xf32>
    %3 = vector.broadcast %2 : vector<1x16xf32> to vector<8x16xf32>
    %4 = arith.subf %0, %3 : vector<8x16xf32>
    %c1 = arith.constant 1 : index
    %c0_5 = arith.constant 0 : index
    %5 = vector.load %arg7[%c1, %c0_5] : memref<2x16xf32, #tpu.memory_space<vmem>>, vector<1x16xf32>
    %6 = vector.broadcast %5 : vector<1x16xf32> to vector<8x16xf32>
    %7 = arith.mulf %4, %6 : vector<8x16xf32>
    %c0_6 = arith.constant 0 : index
    %c0_7 = arith.constant 0 : index
    %8 = vector.load %arg8[%c0_6, %c0_7] : memref<2x4xf32, #tpu.memory_space<vmem>>, vector<1x4xf32>
    %9 = vector.broadcast %8 : vector<1x4xf32> to vector<8x4xf32>
    %10 = arith.subf %1, %9 : vector<8x4xf32>
    %c1_8 = arith.constant 1 : index
    %c0_9 = arith.constant 0 : index
    %11 = vector.load %arg8[%c1_8, %c0_9] : memref<2x4xf32, #tpu.memory_space<vmem>>, vector<1x4xf32>
    %12 = vector.broadcast %11 : vector<1x4xf32> to vector<8x4xf32>
    %13 = arith.mulf %10, %12 : vector<8x4xf32>
    %c0_10 = arith.constant 0 : index
    %c0_11 = arith.constant 0 : index
    %14 = vector.load %arg9[%c0_10, %c0_11] : memref<2x32xf32, #tpu.memory_space<vmem>>, vector<1x32xf32>
    %c1_12 = arith.constant 1 : index
    %c0_13 = arith.constant 0 : index
    %15 = vector.load %arg9[%c1_12, %c0_13] : memref<2x32xf32, #tpu.memory_space<vmem>>, vector<1x32xf32>
    %c0_14 = arith.constant 0 : index
    %c0_15 = arith.constant 0 : index
    %16 = vector.load %arg10[%c0_14, %c0_15] : memref<3x16xf32, #tpu.memory_space<vmem>>, vector<1x16xf32>
    %c1_16 = arith.constant 1 : index
    %c0_17 = arith.constant 0 : index
    %17 = vector.load %arg10[%c1_16, %c0_17] : memref<3x16xf32, #tpu.memory_space<vmem>>, vector<1x16xf32>
    %c2 = arith.constant 2 : index
    %c0_18 = arith.constant 0 : index
    %18 = vector.load %arg10[%c2, %c0_18] : memref<3x16xf32, #tpu.memory_space<vmem>>, vector<1x16xf32>
    %c0_19 = arith.constant 0 : index
    %c0_20 = arith.constant 0 : index
    %19 = vector.load %arg3[%c0_19, %c0_20] : memref<16x32xf32, #tpu.memory_space<vmem>>, vector<16x32xf32>
    %cst = arith.constant dense<0.000000e+00> : vector<8x32xf32>
    %20 = tpu.matmul %7, %19, %cst {dimension_numbers = #tpu.dot_dimension_numbers<[1], [0], [0], [1], [0, 0, 1, 1], [], []>} : vector<8x16xf32>, vector<16x32xf32>, vector<8x32xf32> -> vector<8x32xf32>
    %c0_21 = arith.constant 0 : index
    %c0_22 = arith.constant 0 : index
    %21 = vector.load %arg4[%c0_21, %c0_22] : memref<4x32xf32, #tpu.memory_space<vmem>>, vector<4x32xf32>
    %cst_23 = arith.constant dense<0.000000e+00> : vector<8x32xf32>
    %22 = tpu.matmul %13, %21, %cst_23 {dimension_numbers = #tpu.dot_dimension_numbers<[1], [0], [0], [1], [0, 0, 1, 1], [], []>} : vector<8x4xf32>, vector<4x32xf32>, vector<8x32xf32> -> vector<8x32xf32>
    %23 = arith.addf %20, %22 : vector<8x32xf32>
    %24 = vector.broadcast %14 : vector<1x32xf32> to vector<8x32xf32>
    %25 = arith.addf %23, %24 : vector<8x32xf32>
    %26 = math.tanh %25 : vector<8x32xf32>
    %c0_24 = arith.constant 0 : index
    %c0_25 = arith.constant 0 : index
    %27 = vector.load %arg5[%c0_24, %c0_25] : memref<32x32xf32, #tpu.memory_space<vmem>>, vector<32x32xf32>
    %cst_26 = arith.constant dense<0.000000e+00> : vector<8x32xf32>
    %28 = tpu.matmul %26, %27, %cst_26 {dimension_numbers = #tpu.dot_dimension_numbers<[1], [0], [0], [1], [0, 0, 1, 1], [], []>} : vector<8x32xf32>, vector<32x32xf32>, vector<8x32xf32> -> vector<8x32xf32>
    %29 = vector.broadcast %15 : vector<1x32xf32> to vector<8x32xf32>
    %30 = arith.addf %28, %29 : vector<8x32xf32>
    %31 = math.tanh %30 : vector<8x32xf32>
    %c0_27 = arith.constant 0 : index
    %c0_28 = arith.constant 0 : index
    %32 = vector.load %arg6[%c0_27, %c0_28] : memref<32x16xf32, #tpu.memory_space<vmem>>, vector<32x16xf32>
    %cst_29 = arith.constant dense<0.000000e+00> : vector<8x16xf32>
    %33 = tpu.matmul %31, %32, %cst_29 {dimension_numbers = #tpu.dot_dimension_numbers<[1], [0], [0], [1], [0, 0, 1, 1], [], []>} : vector<8x32xf32>, vector<32x16xf32>, vector<8x16xf32> -> vector<8x16xf32>
    %34 = vector.broadcast %16 : vector<1x16xf32> to vector<8x16xf32>
    %35 = arith.addf %33, %34 : vector<8x16xf32>
    %c0_30 = arith.constant 0 : index
    %c0_31 = arith.constant 0 : index
    %36 = vector.load %arg12[%c0_30, %c0_31] : memref<8x16xf32, #tpu.memory_space<vmem>>, vector<8x16xf32>
    tpu.vector_store %arg12[%c0_30, %c0_31], %35 {strides = array<i32>} : memref<8x16xf32, #tpu.memory_space<vmem>>, vector<8x16xf32>,
    %37 = vector.broadcast %18 : vector<1x16xf32> to vector<8x16xf32>
    %38 = arith.mulf %35, %37 : vector<8x16xf32>
    %39 = arith.addf %0, %38 : vector<8x16xf32>
    %40 = vector.broadcast %17 : vector<1x16xf32> to vector<8x16xf32>
    %41 = arith.addf %39, %40 : vector<8x16xf32>
    %c0_32 = arith.constant 0 : index
    %c0_33 = arith.constant 0 : index
    %42 = vector.load %arg11[%c0_32, %c0_33] : memref<8x16xf32, #tpu.memory_space<vmem>>, vector<8x16xf32>
    tpu.vector_store %arg11[%c0_32, %c0_33], %41 {strides = array<i32>} : memref<8x16xf32, #tpu.memory_space<vmem>>, vector<8x16xf32>,
    return
  }
  func.func @transform_0(%arg0: i32) -> (i32, i32) {
    %c0_i32 = arith.constant 0 : i32
    %c0_i32_0 = arith.constant 0 : i32
    return %arg0, %c0_i32 : i32, i32
  }
  func.func @transform_1(%arg0: i32) -> (i32, i32) {
    %c0_i32 = arith.constant 0 : i32
    %c0_i32_0 = arith.constant 0 : i32
    return %arg0, %c0_i32 : i32, i32
  }
  func.func @transform_2(%arg0: i32) -> (i32, i32) {
    %c0_i32 = arith.constant 0 : i32
    %c0_i32_0 = arith.constant 0 : i32
    %c0_i32_1 = arith.constant 0 : i32
    return %c0_i32, %c0_i32_0 : i32, i32
  }
  func.func @transform_3(%arg0: i32) -> (i32, i32) {
    %c0_i32 = arith.constant 0 : i32
    %c0_i32_0 = arith.constant 0 : i32
    %c0_i32_1 = arith.constant 0 : i32
    return %c0_i32, %c0_i32_0 : i32, i32
  }
  func.func @transform_4(%arg0: i32) -> (i32, i32) {
    %c0_i32 = arith.constant 0 : i32
    %c0_i32_0 = arith.constant 0 : i32
    %c0_i32_1 = arith.constant 0 : i32
    return %c0_i32, %c0_i32_0 : i32, i32
  }
  func.func @transform_5(%arg0: i32) -> (i32, i32) {
    %c0_i32 = arith.constant 0 : i32
    %c0_i32_0 = arith.constant 0 : i32
    %c0_i32_1 = arith.constant 0 : i32
    return %c0_i32, %c0_i32_0 : i32, i32
  }
  func.func @transform_6(%arg0: i32) -> (i32, i32) {
    %c0_i32 = arith.constant 0 : i32
    %c0_i32_0 = arith.constant 0 : i32
    %c0_i32_1 = arith.constant 0 : i32
    return %c0_i32, %c0_i32_0 : i32, i32
  }
  func.func @transform_7(%arg0: i32) -> (i32, i32) {
    %c0_i32 = arith.constant 0 : i32
    %c0_i32_0 = arith.constant 0 : i32
    %c0_i32_1 = arith.constant 0 : i32
    return %c0_i32, %c0_i32_0 : i32, i32
  }
  func.func @transform_8(%arg0: i32) -> (i32, i32) {
    %c0_i32 = arith.constant 0 : i32
    %c0_i32_0 = arith.constant 0 : i32
    %c0_i32_1 = arith.constant 0 : i32
    return %c0_i32, %c0_i32_0 : i32, i32
  }
  func.func @transform_9(%arg0: i32) -> (i32, i32) {
    %c0_i32 = arith.constant 0 : i32
    %c0_i32_0 = arith.constant 0 : i32
    %c0_i32_1 = arith.constant 0 : i32
    return %c0_i32, %c0_i32_0 : i32, i32
  }
  func.func @transform_10(%arg0: i32) -> (i32, i32) {
    %c0_i32 = arith.constant 0 : i32
    %c0_i32_0 = arith.constant 0 : i32
    return %arg0, %c0_i32 : i32, i32
  }
  func.func @transform_11(%arg0: i32) -> (i32, i32) {
    %c0_i32 = arith.constant 0 : i32
    %c0_i32_0 = arith.constant 0 : i32
    return %arg0, %c0_i32 : i32, i32
  }
}

</mosaic_0001>

<llo_original>
// kernel: tpu_custom_call.1
$region0: #{tpu_custom_call.1}
  #allocation0 [shape = 'u32[]', space=smem, size = 0x4, offset = 0x4, fixed_abs, tag = 'smem constant byte address 0x4 - core index']
  #allocation1 [shape = 'u32[144,128]{1,0:T(1,128)}', space=vmem, size = 0x12000, scoped, tag = 'internal scratch']
  %s0 = inlined_call_operand.vmem [shape: f32[8,16], index: 0, kind: input, shape index: {}]
  %s1 = inlined_call_operand.vmem [shape: f32[8,4], index: 1, kind: input, shape index: {}]
  %s2 = inlined_call_operand.vmem [shape: f32[16,32], index: 2, kind: input, shape index: {}]
  %s3 = inlined_call_operand.vmem [shape: f32[4,32], index: 3, kind: input, shape index: {}]
  %s4 = inlined_call_operand.vmem [shape: f32[32,32], index: 4, kind: input, shape index: {}]
  %s5 = inlined_call_operand.vmem [shape: f32[32,16], index: 5, kind: input, shape index: {}]
  %s6 = inlined_call_operand.vmem [shape: f32[2,16], index: 6, kind: input, shape index: {}]
  %s7 = inlined_call_operand.vmem [shape: f32[2,4], index: 7, kind: input, shape index: {}]
  %s8 = inlined_call_operand.vmem [shape: f32[2,32], index: 8, kind: input, shape index: {}]
  %s9 = inlined_call_operand.vmem [shape: f32[3,16], index: 9, kind: input, shape index: {}]
  %s10 = inlined_call_operand.hbm [shape: f32[8,16], index: 10, kind: output, shape index: {0}]
  %s11 = inlined_call_operand.hbm [shape: f32[8,16], index: 11, kind: output, shape index: {1}]
  %12 = xla_tuple %s10, %s11
  %s13 = sld [smem:[#allocation0]]
  $region58: #{tpu_custom_call.1} parent=0
    _
  %s15 = ssub.s32 1, %s13
  %s16 = scalar_select 0, %s15, %s13
  $region1: #{tpu_custom_call.1} parent=0
    #allocation2 [shape = 'u8[4096]{0}', space=vmem, size = 0x1000, scoped, tag = 'output window, operand 0, single buffered']
    #allocation3 [shape = 's32[1]{0}', space=sflag, size = 0x4, scoped, tag = 'scoped memory for tpu_custom_call.1']
    #allocation4 [shape = 'u8[4096]{0}', space=vmem, size = 0x1000, scoped, tag = 'output window, operand 1, single buffered']
    #allocation5 [shape = 's32[1]{0}', space=sflag, size = 0x4, scoped, tag = 'scoped memory for tpu_custom_call.1']
    %17 = vsyncpa [#allocation3], 0
    %18 = vsyncpa [#allocation5], 0
    // Predicated region
    $region2: #{tpu_custom_call.1} parent=1 // pred_check
      _
    $region3: #{tpu_custom_call.1} parent=1 // pred_check_branch
      %20 = sbr.rel (0) target = $region5
    $region4: #{tpu_custom_call.1} parent=1 // pred_region
      _
    $region5: #{tpu_custom_call.1} parent=1 // pred_fallthru
      _
    // Predicated region
    $region6: #{tpu_custom_call.1} parent=1 // pred_check
      _
    $region7: #{tpu_custom_call.1} parent=1 // pred_check_branch
      %22 = sbr.rel (0) target = $region9
    $region8: #{tpu_custom_call.1} parent=1 // pred_region
      _
    $region9: #{tpu_custom_call.1} parent=1 // pred_fallthru
      _
    // Predicated region
    $region10: #{tpu_custom_call.1} parent=1 // pred_check
      _
    $region11: #{tpu_custom_call.1} parent=1 // pred_check_branch
      %24 = sbr.rel (0) target = $region13
    $region12: #{tpu_custom_call.1} parent=1 // pred_region
      _
    $region13: #{tpu_custom_call.1} parent=1 // pred_fallthru
      _
    // Predicated region
    $region14: #{tpu_custom_call.1} parent=1 // pred_check
      _
    $region15: #{tpu_custom_call.1} parent=1 // pred_check_branch
      %26 = sbr.rel (0) target = $region17
    $region16: #{tpu_custom_call.1} parent=1 // pred_region
      _
    $region17: #{tpu_custom_call.1} parent=1 // pred_fallthru
      _
    // Predicated region
    $region18: #{tpu_custom_call.1} parent=1 // pred_check
      _
    $region19: #{tpu_custom_call.1} parent=1 // pred_check_branch
      %28 = sbr.rel (0) target = $region21
    $region20: #{tpu_custom_call.1} parent=1 // pred_region
      _
    $region21: #{tpu_custom_call.1} parent=1 // pred_fallthru
      _
    // Predicated region
    $region22: #{tpu_custom_call.1} parent=1 // pred_check
      _
    $region23: #{tpu_custom_call.1} parent=1 // pred_check_branch
      %30 = sbr.rel (0) target = $region25
    $region24: #{tpu_custom_call.1} parent=1 // pred_region
      _
    $region25: #{tpu_custom_call.1} parent=1 // pred_fallthru
      _
    // Predicated region
    $region26: #{tpu_custom_call.1} parent=1 // pred_check
      _
    $region27: #{tpu_custom_call.1} parent=1 // pred_check_branch
      %32 = sbr.rel (0) target = $region29
    $region28: #{tpu_custom_call.1} parent=1 // pred_region
      _
    $region29: #{tpu_custom_call.1} parent=1 // pred_fallthru
      _
    // Predicated region
    $region30: #{tpu_custom_call.1} parent=1 // pred_check
      _
    $region31: #{tpu_custom_call.1} parent=1 // pred_check_branch
      %34 = sbr.rel (0) target = $region33
    $region32: #{tpu_custom_call.1} parent=1 // pred_region
      _
    $region33: #{tpu_custom_call.1} parent=1 // pred_fallthru
      _
    // Predicated region
    $region34: #{tpu_custom_call.1} parent=1 // pred_check
      _
    $region35: #{tpu_custom_call.1} parent=1 // pred_check_branch
      %36 = sbr.rel (0) target = $region37
    $region36: #{tpu_custom_call.1} parent=1 // pred_region
      _
    $region37: #{tpu_custom_call.1} parent=1 // pred_fallthru
      _
    // Predicated region
    $region38: #{tpu_custom_call.1} parent=1 // pred_check
      _
    $region39: #{tpu_custom_call.1} parent=1 // pred_check_branch
      %38 = sbr.rel (0) target = $region41
    $region40: #{tpu_custom_call.1} parent=1 // pred_region
      _
    $region41: #{tpu_custom_call.1} parent=1 // pred_fallthru
      _
    %v39 = vld [vmem:[%s0] sm:$0xff]
    %v40 = vld [vmem:[%s1] sm:$0xff]
    %v41 = vld [vmem:[%s6] sm:$0x1]
    %v42 = vlaneseq
    %v43 = vshrl.u32 %v42, 7
    %v44 = vsub.s32 0, %v43
    %v45 = vrot.slane %v41, %v44
    %v46 = vsub.f32 %v39, %v45
    %v47 = vld [vmem:[%s6 + $0x1] sm:$0x1]
    %v48 = vlaneseq
    %v49 = vshrl.u32 %v48, 7
    %v50 = vsub.s32 0, %v49
    %v51 = vrot.slane %v47, %v50
    %v52 = vmul.f32 %v46, %v51
    %v53 = vld [vmem:[%s7] sm:$0x1]
    %v54 = vlaneseq
    %v55 = vshrl.u32 %v54, 7
    %v56 = vsub.s32 0, %v55
    %v57 = vrot.slane %v53, %v56
    %v58 = vsub.f32 %v40, %v57
    %v59 = vld [vmem:[%s7 + $0x1] sm:$0x1]
    %v60 = vlaneseq
    %v61 = vshrl.u32 %v60, 7
    %v62 = vsub.s32 0, %v61
    %v63 = vrot.slane %v59, %v62
    %v64 = vmul.f32 %v58, %v63
    %v65 = vld [vmem:[%s8] sm:$0x1]
    %v66 = vld [vmem:[%s8 + $0x1] sm:$0x1]
    %v67 = vld [vmem:[%s9] sm:$0x1]
    %v68 = vld [vmem:[%s9 + $0x1] sm:$0x1]
    %v69 = vld [vmem:[%s9 + $0x2] sm:$0x1]
    %v70 = vld [vmem:[%s2] sm:$0xff]
    %v71 = vld [vmem:[%s2 + $0x8] sm:$0xff]
    %v72 = vld [vmem:[%s3] sm:$0xf]
    %vm73 = vcmask 31744
    %v75 = vsel %vm73, %v64, 0
    %vm77 = vcmask 1043456
    %v79 = vsel %vm77, %v72, 0
    %81 = vmatprep.subr.mxu0 0.0
    %82 = vmatpush1.msra.mxu0 %v79
    %83 = vmatprep.subr.mxu0 0.0
    %84 = vmatpush1.msra.mxu0 0.0
    %85 = vmatprep.subr.mxu0 0.0
    %86 = vmatpush1.msra.mxu0 0.0
    %87 = vmatprep.subr.mxu0 0.0
    %88 = vmatpush1.msra.mxu0 0.0
    %89 = vmatprep.subr.mxu0 0.0
    %90 = vmatpush1.msra.mxu0 0.0
    %91 = vmatprep.subr.mxu0 0.0
    %92 = vmatpush1.msra.mxu0 0.0
    %93 = vmatprep.subr.mxu0 0.0
    %94 = vmatpush1.msra.mxu0 0.0
    %95 = vmatprep.subr.mxu0 0.0
    %96 = vmatpush1.msra.mxu0 0.0
    %97 = vmatprep.subr.mxu0 0.0
    %98 = vmatpush1.msra.mxu0 0.0
    %99 = vmatprep.subr.mxu0 0.0
    %100 = vmatpush1.msra.mxu0 0.0
    %101 = vmatprep.subr.mxu0 0.0
    %102 = vmatpush1.msra.mxu0 0.0
    %103 = vmatprep.subr.mxu0 0.0
    %104 = vmatpush1.msra.mxu0 0.0
    %105 = vmatprep.subr.mxu0 0.0
    %106 = vmatpush1.msra.mxu0 0.0
    %107 = vmatprep.subr.mxu0 0.0
    %108 = vmatpush1.msra.mxu0 0.0
    %109 = vmatprep.subr.mxu0 0.0
    %110 = vmatpush1.msra.mxu0 0.0
    %111 = vmatprep.subr.mxu0 0.0
    %112 = vmatpush1.msra.mxu0 0.0
    %113 = vmatprep.subr.mxu0 0.0
    %114 = vmatpush1.msra.mxu0 0.0
    %115 = vmatprep.subr.mxu0 0.0
    %116 = vmatpush1.msra.mxu0 0.0
    %117 = vmatprep.subr.mxu0 0.0
    %118 = vmatpush1.msra.mxu0 0.0
    %119 = vmatprep.subr.mxu0 0.0
    %120 = vmatpush1.msra.mxu0 0.0
    %121 = vmatprep.subr.mxu0 0.0
    %122 = vmatpush1.msra.mxu0 0.0
    %123 = vmatprep.subr.mxu0 0.0
    %124 = vmatpush1.msra.mxu0 0.0
    %125 = vmatprep.subr.mxu0 0.0
    %126 = vmatpush1.msra.mxu0 0.0
    %127 = vmatprep.subr.mxu0 0.0
    %128 = vmatpush1.msra.mxu0 0.0
    %129 = vmatprep.subr.mxu0 0.0
    %130 = vmatpush1.msra.mxu0 0.0
    %131 = vmatprep.subr.mxu0 0.0
    %132 = vmatpush1.msra.mxu0 0.0
    %133 = vmatprep.subr.mxu0 0.0
    %134 = vmatpush1.msra.mxu0 0.0
    %135 = vmatprep.subr.mxu0 0.0
    %136 = vmatpush1.msra.mxu0 0.0
    %137 = vmatprep.subr.mxu0 0.0
    %138 = vmatpush1.msra.mxu0 0.0
    %139 = vmatprep.subr.mxu0 0.0
    %140 = vmatpush1.msra.mxu0 0.0
    %141 = vmatprep.subr.mxu0 0.0
    %142 = vmatpush1.msra.mxu0 0.0
    %143 = vmatprep.subr.mxu0 0.0
    %144 = vmatpush1.msra.mxu0 0.0
    %145 = vmatprep.mubr.f32.mxu0 0.0
    %146 = vmatmul.mubr.f32.gmra.mrb[0].mxu0 %v75
    %v147 = vpop.f32.mrb[0].mxu0
    %v148 = vadd.f32 0.0, %v147
    %v149 = vpop.f32.mrb[0].mxu0
    %150 = vdwg.mxu0
    %vm151 = vcmask 130048
    %v153 = vsel %vm151, %v52, 0
    %155 = vmatprep.subr.mxu0 0.0
    %156 = vmatpush1.msra.mxu0 %v70
    %157 = vmatprep.subr.mxu0 0.0
    %158 = vmatpush1.msra.mxu0 %v71
    %159 = vmatprep.subr.mxu0 0.0
    %160 = vmatpush1.msra.mxu0 0.0
    %161 = vmatprep.subr.mxu0 0.0
    %162 = vmatpush1.msra.mxu0 0.0
    %163 = vmatprep.subr.mxu0 0.0
    %164 = vmatpush1.msra.mxu0 0.0
    %165 = vmatprep.subr.mxu0 0.0
    %166 = vmatpush1.msra.mxu0 0.0
    %167 = vmatprep.subr.mxu0 0.0
    %168 = vmatpush1.msra.mxu0 0.0
    %169 = vmatprep.subr.mxu0 0.0
    %170 = vmatpush1.msra.mxu0 0.0
    %171 = vmatprep.subr.mxu0 0.0
    %172 = vmatpush1.msra.mxu0 0.0
    %173 = vmatprep.subr.mxu0 0.0
    %174 = vmatpush1.msra.mxu0 0.0
    %175 = vmatprep.subr.mxu0 0.0
    %176 = vmatpush1.msra.mxu0 0.0
    %177 = vmatprep.subr.mxu0 0.0
    %178 = vmatpush1.msra.mxu0 0.0
    %179 = vmatprep.subr.mxu0 0.0
    %180 = vmatpush1.msra.mxu0 0.0
    %181 = vmatprep.subr.mxu0 0.0
    %182 = vmatpush1.msra.mxu0 0.0
    %183 = vmatprep.subr.mxu0 0.0
    %184 = vmatpush1.msra.mxu0 0.0
    %185 = vmatprep.subr.mxu0 0.0
    %186 = vmatpush1.msra.mxu0 0.0
    %187 = vmatprep.subr.mxu0 0.0
    %188 = vmatpush1.msra.mxu0 0.0
    %189 = vmatprep.subr.mxu0 0.0
    %190 = vmatpush1.msra.mxu0 0.0
    %191 = vmatprep.subr.mxu0 0.0
    %192 = vmatpush1.msra.mxu0 0.0
    %193 = vmatprep.subr.mxu0 0.0
    %194 = vmatpush1.msra.mxu0 0.0
    %195 = vmatprep.subr.mxu0 0.0
    %196 = vmatpush1.msra.mxu0 0.0
    %197 = vmatprep.subr.mxu0 0.0
    %198 = vmatpush1.msra.mxu0 0.0
    %199 = vmatprep.subr.mxu0 0.0
    %200 = vmatpush1.msra.mxu0 0.0
    %201 = vmatprep.subr.mxu0 0.0
    %202 = vmatpush1.msra.mxu0 0.0
    %203 = vmatprep.subr.mxu0 0.0
    %204 = vmatpush1.msra.mxu0 0.0
    %205 = vmatprep.subr.mxu0 0.0
    %206 = vmatpush1.msra.mxu0 0.0
    %207 = vmatprep.subr.mxu0 0.0
    %208 = vmatpush1.msra.mxu0 0.0
    %209 = vmatprep.subr.mxu0 0.0
    %210 = vmatpush1.msra.mxu0 0.0
    %211 = vmatprep.subr.mxu0 0.0
    %212 = vmatpush1.msra.mxu0 0.0
    %213 = vmatprep.subr.mxu0 0.0
    %214 = vmatpush1.msra.mxu0 0.0
    %215 = vmatprep.subr.mxu0 0.0
    %216 = vmatpush1.msra.mxu0 0.0
    %217 = vmatprep.subr.mxu0 0.0
    %218 = vmatpush1.msra.mxu0 0.0
    %219 = vmatprep.mubr.f32.mxu0 0.0
    %220 = vmatmul.mubr.f32.gmra.mrb[0].mxu0 %v153
    %v221 = vpop.f32.mrb[0].mxu0
    %v222 = vadd.f32 %v148, %v221
    %v223 = vpop.f32.mrb[0].mxu0
    %224 = vdwg.mxu0
    %v225 = vlaneseq
    %v226 = vshrl.u32 %v225, 7
    %v227 = vsub.s32 0, %v226
    %v228 = vrot.slane %v65, %v227
    %v229 = vadd.f32 %v222, %v228
    %v230 = vtanh.pop %v229
    %v231 = vld [vmem:[%s4] sm:$0xff]
    %v232 = vld [vmem:[%s4 + $0x8] sm:$0xff]
    %v233 = vld [vmem:[%s4 + $0x10] sm:$0xff]
    %v234 = vld [vmem:[%s4 + $0x18] sm:$0xff]
    %v235 = vlaneseq
    %v236 = vshrl.u32 %v235, 7
    %v237 = vsub.s32 0, %v236
    %v238 = vrot.slane %v66, %v237
    %vm239 = vcmask 261120
    %v241 = vsel %vm239, %v230, 0
    %243 = vmatprep.subr.mxu0 0.0
    %244 = vmatpush1.msra.mxu0 %v231
    %245 = vmatprep.subr.mxu0 0.0
    %246 = vmatpush1.msra.mxu0 %v232
    %247 = vmatprep.subr.mxu0 0.0
    %248 = vmatpush1.msra.mxu0 %v233
    %249 = vmatprep.subr.mxu0 0.0
    %250 = vmatpush1.msra.mxu0 %v234
    %251 = vmatprep.subr.mxu0 0.0
    %252 = vmatpush1.msra.mxu0 0.0
    %253 = vmatprep.subr.mxu0 0.0
    %254 = vmatpush1.msra.mxu0 0.0
    %255 = vmatprep.subr.mxu0 0.0
    %256 = vmatpush1.msra.mxu0 0.0
    %257 = vmatprep.subr.mxu0 0.0
    %258 = vmatpush1.msra.mxu0 0.0
    %259 = vmatprep.subr.mxu0 0.0
    %260 = vmatpush1.msra.mxu0 0.0
    %261 = vmatprep.subr.mxu0 0.0
    %262 = vmatpush1.msra.mxu0 0.0
    %263 = vmatprep.subr.mxu0 0.0
    %264 = vmatpush1.msra.mxu0 0.0
    %265 = vmatprep.subr.mxu0 0.0
    %266 = vmatpush1.msra.mxu0 0.0
    %267 = vmatprep.subr.mxu0 0.0
    %268 = vmatpush1.msra.mxu0 0.0
    %269 = vmatprep.subr.mxu0 0.0
    %270 = vmatpush1.msra.mxu0 0.0
    %271 = vmatprep.subr.mxu0 0.0
    %272 = vmatpush1.msra.mxu0 0.0
    %273 = vmatprep.subr.mxu0 0.0
    %274 = vmatpush1.msra.mxu0 0.0
    %275 = vmatprep.subr.mxu0 0.0
    %276 = vmatpush1.msra.mxu0 0.0
    %277 = vmatprep.subr.mxu0 0.0
    %278 = vmatpush1.msra.mxu0 0.0
    %279 = vmatprep.subr.mxu0 0.0
    %280 = vmatpush1.msra.mxu0 0.0
    %281 = vmatprep.subr.mxu0 0.0
    %282 = vmatpush1.msra.mxu0 0.0
    %283 = vmatprep.subr.mxu0 0.0
    %284 = vmatpush1.msra.mxu0 0.0
    %285 = vmatprep.subr.mxu0 0.0
    %286 = vmatpush1.msra.mxu0 0.0
    %287 = vmatprep.subr.mxu0 0.0
    %288 = vmatpush1.msra.mxu0 0.0
    %289 = vmatprep.subr.mxu0 0.0
    %290 = vmatpush1.msra.mxu0 0.0
    %291 = vmatprep.subr.mxu0 0.0
    %292 = vmatpush1.msra.mxu0 0.0
    %293 = vmatprep.subr.mxu0 0.0
    %294 = vmatpush1.msra.mxu0 0.0
    %295 = vmatprep.subr.mxu0 0.0
    %296 = vmatpush1.msra.mxu0 0.0
    %297 = vmatprep.subr.mxu0 0.0
    %298 = vmatpush1.msra.mxu0 0.0
    %299 = vmatprep.subr.mxu0 0.0
    %300 = vmatpush1.msra.mxu0 0.0
    %301 = vmatprep.subr.mxu0 0.0
    %302 = vmatpush1.msra.mxu0 0.0
    %303 = vmatprep.subr.mxu0 0.0
    %304 = vmatpush1.msra.mxu0 0.0
    %305 = vmatprep.subr.mxu0 0.0
    %306 = vmatpush1.msra.mxu0 0.0
    %307 = vmatprep.mubr.f32.mxu0 0.0
    %308 = vmatmul.mubr.f32.gmra.mrb[0].mxu0 %v241
    %v309 = vpop.f32.mrb[0].mxu0
    %v310 = vadd.f32 %v238, %v309
    %v311 = vpop.f32.mrb[0].mxu0
    %312 = vdwg.mxu0
    %v313 = vtanh.pop %v310
    %v314 = vld [vmem:[%s5] sm:$0xff]
    %v315 = vld [vmem:[%s5 + $0x8] sm:$0xff]
    %v316 = vld [vmem:[%s5 + $0x10] sm:$0xff]
    %v317 = vld [vmem:[%s5 + $0x18] sm:$0xff]
    %v318 = vlaneseq
    %v319 = vshrl.u32 %v318, 7
    %v320 = vsub.s32 0, %v319
    %v321 = vrot.slane %v67, %v320
    %v323 = vsel %vm239, %v313, 0
    %325 = vmatprep.subr.mxu0 0.0
    %326 = vmatpush1.msra.mxu0 %v314
    %327 = vmatprep.subr.mxu0 0.0
    %328 = vmatpush1.msra.mxu0 %v315
    %329 = vmatprep.subr.mxu0 0.0
    %330 = vmatpush1.msra.mxu0 %v316
    %331 = vmatprep.subr.mxu0 0.0
    %332 = vmatpush1.msra.mxu0 %v317
    %333 = vmatprep.subr.mxu0 0.0
    %334 = vmatpush1.msra.mxu0 0.0
    %335 = vmatprep.subr.mxu0 0.0
    %336 = vmatpush1.msra.mxu0 0.0
    %337 = vmatprep.subr.mxu0 0.0
    %338 = vmatpush1.msra.mxu0 0.0
    %339 = vmatprep.subr.mxu0 0.0
    %340 = vmatpush1.msra.mxu0 0.0
    %341 = vmatprep.subr.mxu0 0.0
    %342 = vmatpush1.msra.mxu0 0.0
    %343 = vmatprep.subr.mxu0 0.0
    %344 = vmatpush1.msra.mxu0 0.0
    %345 = vmatprep.subr.mxu0 0.0
    %346 = vmatpush1.msra.mxu0 0.0
    %347 = vmatprep.subr.mxu0 0.0
    %348 = vmatpush1.msra.mxu0 0.0
    %349 = vmatprep.subr.mxu0 0.0
    %350 = vmatpush1.msra.mxu0 0.0
    %351 = vmatprep.subr.mxu0 0.0
    %352 = vmatpush1.msra.mxu0 0.0
    %353 = vmatprep.subr.mxu0 0.0
    %354 = vmatpush1.msra.mxu0 0.0
    %355 = vmatprep.subr.mxu0 0.0
    %356 = vmatpush1.msra.mxu0 0.0
    %357 = vmatprep.subr.mxu0 0.0
    %358 = vmatpush1.msra.mxu0 0.0
    %359 = vmatprep.subr.mxu0 0.0
    %360 = vmatpush1.msra.mxu0 0.0
    %361 = vmatprep.subr.mxu0 0.0
    %362 = vmatpush1.msra.mxu0 0.0
    %363 = vmatprep.subr.mxu0 0.0
    %364 = vmatpush1.msra.mxu0 0.0
    %365 = vmatprep.subr.mxu0 0.0
    %366 = vmatpush1.msra.mxu0 0.0
    %367 = vmatprep.subr.mxu0 0.0
    %368 = vmatpush1.msra.mxu0 0.0
    %369 = vmatprep.subr.mxu0 0.0
    %370 = vmatpush1.msra.mxu0 0.0
    %371 = vmatprep.subr.mxu0 0.0
    %372 = vmatpush1.msra.mxu0 0.0
    %373 = vmatprep.subr.mxu0 0.0
    %374 = vmatpush1.msra.mxu0 0.0
    %375 = vmatprep.subr.mxu0 0.0
    %376 = vmatpush1.msra.mxu0 0.0
    %377 = vmatprep.subr.mxu0 0.0
    %378 = vmatpush1.msra.mxu0 0.0
    %379 = vmatprep.subr.mxu0 0.0
    %380 = vmatpush1.msra.mxu0 0.0
    %381 = vmatprep.subr.mxu0 0.0
    %382 = vmatpush1.msra.mxu0 0.0
    %383 = vmatprep.subr.mxu0 0.0
    %384 = vmatpush1.msra.mxu0 0.0
    %385 = vmatprep.subr.mxu0 0.0
    %386 = vmatpush1.msra.mxu0 0.0
    %387 = vmatprep.subr.mxu0 0.0
    %388 = vmatpush1.msra.mxu0 0.0
    %389 = vmatprep.mubr.f32.mxu0 0.0
    %390 = vmatmul.mubr.f32.gmra.mrb[0].mxu0 %v323
    %v391 = vpop.f32.mrb[0].mxu0
    %v392 = vadd.f32 %v321, %v391
    %v393 = vpop.f32.mrb[0].mxu0
    %394 = vdwg.mxu0
    %395 = vst.msk [vmem:[#allocation4] sm:$0xff] %vm151, %v392
    %v396 = vlaneseq
    %v397 = vshrl.u32 %v396, 7
    %v398 = vsub.s32 0, %v397
    %v399 = vrot.slane %v69, %v398
    %v400 = vmul.f32 %v392, %v399
    %v401 = vadd.f32 %v39, %v400
    %v402 = vlaneseq
    %v403 = vshrl.u32 %v402, 7
    %v404 = vsub.s32 0, %v403
    %v405 = vrot.slane %v68, %v404
    %v406 = vadd.f32 %v401, %v405
    %407 = vst.msk [vmem:[#allocation2] sm:$0xff] %vm151, %v406
    // Predicated region
    $region42: #{tpu_custom_call.1} parent=1 // pred_check
      _
    $region43: #{tpu_custom_call.1} parent=1 // pred_check_branch
      %409 = sbr.rel (0) target = $region45
    $region44: #{tpu_custom_call.1} parent=1 // pred_region
      %s411 = ssub.s32 128, 128
      %412 = vsyncadd [#allocation3], %s411
      %s414 = sshll.u32 [#allocation2], 4
      %s415 = int_to_ptr.vmem [resolvable:$true] %s414
      %417 = dma.vmem_to_hbm [thread:$0]  %s415, 128, %s10, [#allocation3]
    $region45: #{tpu_custom_call.1} parent=1 // pred_fallthru
      _
    // Predicated region
    $region46: #{tpu_custom_call.1} parent=1 // pred_check
      _
    $region47: #{tpu_custom_call.1} parent=1 // pred_check_branch
      %419 = sbr.rel (0) target = $region49
    $region48: #{tpu_custom_call.1} parent=1 // pred_region
      %s421 = ssub.s32 128, 128
      %422 = vsyncadd [#allocation5], %s421
      %s424 = sshll.u32 [#allocation4], 4
      %s425 = int_to_ptr.vmem [resolvable:$true] %s424
      %427 = dma.vmem_to_hbm [thread:$0]  %s425, 128, %s11, [#allocation5]
    $region49: #{tpu_custom_call.1} parent=1 // pred_fallthru
      _
    // Predicated region
    $region50: #{tpu_custom_call.1} parent=1 // pred_check
      _
    $region51: #{tpu_custom_call.1} parent=1 // pred_check_branch
      %429 = sbr.rel (0) target = $region53
    $region52: #{tpu_custom_call.1} parent=1 // pred_region
      %430 = dma.done [#allocation3], 128
    $region53: #{tpu_custom_call.1} parent=1 // pred_fallthru
      _
    // Predicated region
    $region54: #{tpu_custom_call.1} parent=1 // pred_check
      _
    $region55: #{tpu_custom_call.1} parent=1 // pred_check_branch
      %432 = sbr.rel (0) target = $region57
    $region56: #{tpu_custom_call.1} parent=1 // pred_region
      %433 = dma.done [#allocation5], 128
    $region57: #{tpu_custom_call.1} parent=1 // pred_fallthru
      _
    %434 = vsyncpa [#allocation3], 1
    %435 = vsyncpa [#allocation5], 1

</llo_original>
